<compile_context>
chip_gen: v6e
topology: v6e:2x2x1
jax: 0.10.0
libtpu: 0.0.40
codegen_flags: <defaults>
</compile_context>

<pallas_src>
import jax
import jax.numpy as jnp
from jax.experimental import pallas as pl
from jax.experimental.pallas import tpu as pltpu


def dqn_kernel(x_ref, w12_ref, b12_ref, wo_ref, bo_ref, out_ref):
    x = x_ref[...]                                                   # [TB, N_STATES]
    # Fused fc1+fc2 (exact: no activation between them in the reference forward).
    h = jnp.dot(x, w12_ref[...], preferred_element_type=jnp.float32) + b12_ref[...]
    h = jnp.maximum(h, 0.0)                                          # ReLU after fc2
    q = jnp.dot(h, wo_ref[...], preferred_element_type=jnp.float32) + bo_ref[...]
    out_ref[...] = q.astype(out_ref.dtype)


def prepare_params(params):
    """One-time layout + algebraic fusion of PyTorch-convention params.

    params: dict with w_fc1 [10, N_STATES], b_fc1 [10], w_fc2 [10, 10],
            b_fc2 [10], w_out [N_ACTIONS, 10], b_out [N_ACTIONS].
    Returns kernel-ready arrays: W12 [N_STATES, 10], b12 [1, 10],
            Wo [10, N_ACTIONS], bo [1, N_ACTIONS].
    """
    w1t = params["w_fc1"].T.astype(jnp.float32)          # [N_STATES, H]
    w2t = params["w_fc2"].T.astype(jnp.float32)          # [H, H]
    w12 = w1t @ w2t                                       # [N_STATES, H]
    b12 = params["b_fc1"].astype(jnp.float32) @ w2t + params["b_fc2"].astype(jnp.float32)
    return {
        "w12": w12,
        "b12": b12.reshape(1, -1),
        "wo": params["w_out"].T.astype(jnp.float32),      # [H, N_ACTIONS]
        "bo": params["b_out"].astype(jnp.float32).reshape(1, -1),
    }


def dqn_forward(x, prep, *, tb=None):
    """x: [B, N_STATES] float32. prep: output of prepare_params()."""
    B, n_states = x.shape
    hidden = prep["w12"].shape[1]
    n_actions = prep["wo"].shape[1]

    # Batch tile: small batches run as a single block; large batches use
    # 512-row tiles (sublane-aligned) so DMAs amortize and pipelining kicks in.
    if tb is None:
        tb = B if B <= 512 else 512
    grid = (pl.cdiv(B, tb),)

    # Weights/biases stay resident across all batch tiles (constant block index).
    resident = lambda a: pl.BlockSpec(a.shape, lambda i: (0,) * a.ndim)

    cost = pl.CostEstimate(
        flops=2 * B * (n_states * hidden + hidden * n_actions) + 2 * B * hidden,
        transcendentals=0,
        bytes_accessed=4 * (x.size + prep["w12"].size + prep["b12"].size
                            + prep["wo"].size + prep["bo"].size + B * n_actions),
    )

    return pl.pallas_call(
        dqn_kernel,
        out_shape=jax.ShapeDtypeStruct((B, n_actions), jnp.float32),
        grid=grid,
        in_specs=[
            pl.BlockSpec((tb, n_states), lambda i: (i, 0)),
            resident(prep["w12"]),
            resident(prep["b12"]),
            resident(prep["wo"]),
            resident(prep["bo"]),
        ],
        out_specs=pl.BlockSpec((tb, n_actions), lambda i: (i, 0)),
        compiler_params=pltpu.CompilerParams(dimension_semantics=("parallel",)),
        cost_estimate=cost,
    )(x, prep["w12"], prep["b12"], prep["wo"], prep["bo"])


def init_params(key, n_states, n_actions, hidden=10):
    # Synthetic init mirroring the module: weight ~ N(0, 0.1); small random biases.
    k1, k2, k3, k4, k5, k6 = jax.random.split(key, 6)
    return {
        "w_fc1": 0.1 * jax.random.normal(k1, (hidden, n_states), jnp.float32),
        "b_fc1": 0.1 * jax.random.normal(k4, (hidden,), jnp.float32),
        "w_fc2": 0.1 * jax.random.normal(k2, (hidden, hidden), jnp.float32),
        "b_fc2": 0.1 * jax.random.normal(k5, (hidden,), jnp.float32),
        "w_out": 0.1 * jax.random.normal(k3, (n_actions, hidden), jnp.float32),
        "b_out": 0.1 * jax.random.normal(k6, (n_actions,), jnp.float32),
    }


if __name__ == "__main__":
    N_STATES, N_ACTIONS, BATCH = 4, 2, 8

    key = jax.random.PRNGKey(0)
    pkey, xkey = jax.random.split(key)
    params = init_params(pkey, N_STATES, N_ACTIONS)
    x = jax.random.normal(xkey, (BATCH, N_STATES), jnp.float32)

    prep = prepare_params(params)              # one-time: fuse fc1+fc2, fix layouts
    out = jax.block_until_ready(dqn_forward(x, prep))

    # Pure-JAX reference of the exact (unfused) PyTorch forward:
    # fc1 (no act) -> fc2 -> relu -> out.
    h1 = x @ params["w_fc1"].T + params["b_fc1"]
    h2 = jnp.maximum(h1 @ params["w_fc2"].T + params["b_fc2"], 0.0)
    ref = h2 @ params["w_out"].T + params["b_out"]

    assert out.shape == (BATCH, N_ACTIONS)
    assert jnp.allclose(out, ref, atol=1e-5, rtol=1e-5)

    print("KERNEL_OK")
</pallas_src>

<mosaic_0001>
module attributes {stable_mosaic.version = 11 : i64} {
  func.func @dqn_kernel(%arg0: i32, %arg1: memref<8x4xf32, #tpu.memory_space<vmem>>, %arg2: memref<4x10xf32, #tpu.memory_space<vmem>>, %arg3: memref<1x10xf32, #tpu.memory_space<vmem>>, %arg4: memref<10x2xf32, #tpu.memory_space<vmem>>, %arg5: memref<1x2xf32, #tpu.memory_space<vmem>>, %arg6: memref<8x2xf32, #tpu.memory_space<vmem>>) attributes {dimension_semantics = [#tpu.dimension_semantics<parallel>], iteration_bounds = array<i64: 1>, scalar_prefetch = 0 : i64, scratch_operands = 0 : i64, tpu.core_type = #tpu.core_type<tc>, window_params = [{transform_indices = @transform_0, window_bounds = array<i64: 8, 4>}, {pipeline_mode = #tpu.pipeline_mode<synchronous>, transform_indices = @transform_1, window_bounds = array<i64: 4, 10>}, {pipeline_mode = #tpu.pipeline_mode<synchronous>, transform_indices = @transform_2, window_bounds = array<i64: 1, 10>}, {pipeline_mode = #tpu.pipeline_mode<synchronous>, transform_indices = @transform_3, window_bounds = array<i64: 10, 2>}, {pipeline_mode = #tpu.pipeline_mode<synchronous>, transform_indices = @transform_4, window_bounds = array<i64: 1, 2>}, {transform_indices = @transform_5, window_bounds = array<i64: 8, 2>}]} {
    %c0 = arith.constant 0 : index
    %c0_0 = arith.constant 0 : index
    %0 = vector.load %arg1[%c0, %c0_0] : memref<8x4xf32, #tpu.memory_space<vmem>>, vector<8x4xf32>
    %c0_1 = arith.constant 0 : index
    %c0_2 = arith.constant 0 : index
    %1 = vector.load %arg2[%c0_1, %c0_2] : memref<4x10xf32, #tpu.memory_space<vmem>>, vector<4x10xf32>
    %cst = arith.constant dense<0.000000e+00> : vector<8x10xf32>
    %2 = tpu.matmul %0, %1, %cst {dimension_numbers = #tpu.dot_dimension_numbers<[1], [0], [0], [1], [0, 0, 1, 1], [], []>} : vector<8x4xf32>, vector<4x10xf32>, vector<8x10xf32> -> vector<8x10xf32>
    %c0_3 = arith.constant 0 : index
    %c0_4 = arith.constant 0 : index
    %3 = vector.load %arg3[%c0_3, %c0_4] : memref<1x10xf32, #tpu.memory_space<vmem>>, vector<1x10xf32>
    %4 = vector.broadcast %3 : vector<1x10xf32> to vector<8x10xf32>
    %5 = arith.addf %2, %4 : vector<8x10xf32>
    %cst_5 = arith.constant 0.000000e+00 : f32
    %6 = vector.broadcast %cst_5 : f32 to vector<8x10xf32>
    %7 = arith.maximumf %5, %6 : vector<8x10xf32>
    %c0_6 = arith.constant 0 : index
    %c0_7 = arith.constant 0 : index
    %8 = vector.load %arg4[%c0_6, %c0_7] : memref<10x2xf32, #tpu.memory_space<vmem>>, vector<10x2xf32>
    %cst_8 = arith.constant dense<0.000000e+00> : vector<8x2xf32>
    %9 = tpu.matmul %7, %8, %cst_8 {dimension_numbers = #tpu.dot_dimension_numbers<[1], [0], [0], [1], [0, 0, 1, 1], [], []>} : vector<8x10xf32>, vector<10x2xf32>, vector<8x2xf32> -> vector<8x2xf32>
    %c0_9 = arith.constant 0 : index
    %c0_10 = arith.constant 0 : index
    %10 = vector.load %arg5[%c0_9, %c0_10] : memref<1x2xf32, #tpu.memory_space<vmem>>, vector<1x2xf32>
    %11 = vector.broadcast %10 : vector<1x2xf32> to vector<8x2xf32>
    %12 = arith.addf %9, %11 : vector<8x2xf32>
    %c0_11 = arith.constant 0 : index
    %c0_12 = arith.constant 0 : index
    %13 = vector.load %arg6[%c0_11, %c0_12] : memref<8x2xf32, #tpu.memory_space<vmem>>, vector<8x2xf32>
    tpu.vector_store %arg6[%c0_11, %c0_12], %12 {strides = array<i32>} : memref<8x2xf32, #tpu.memory_space<vmem>>, vector<8x2xf32>,
    return
  }
  func.func @transform_0(%arg0: i32) -> (i32, i32) {
    %c0_i32 = arith.constant 0 : i32
    %c0_i32_0 = arith.constant 0 : i32
    return %arg0, %c0_i32 : i32, i32
  }
  func.func @transform_1(%arg0: i32) -> (i32, i32) {
    %c0_i32 = arith.constant 0 : i32
    %c0_i32_0 = arith.constant 0 : i32
    %c0_i32_1 = arith.constant 0 : i32
    return %c0_i32, %c0_i32_0 : i32, i32
  }
  func.func @transform_2(%arg0: i32) -> (i32, i32) {
    %c0_i32 = arith.constant 0 : i32
    %c0_i32_0 = arith.constant 0 : i32
    %c0_i32_1 = arith.constant 0 : i32
    return %c0_i32, %c0_i32_0 : i32, i32
  }
  func.func @transform_3(%arg0: i32) -> (i32, i32) {
    %c0_i32 = arith.constant 0 : i32
    %c0_i32_0 = arith.constant 0 : i32
    %c0_i32_1 = arith.constant 0 : i32
    return %c0_i32, %c0_i32_0 : i32, i32
  }
  func.func @transform_4(%arg0: i32) -> (i32, i32) {
    %c0_i32 = arith.constant 0 : i32
    %c0_i32_0 = arith.constant 0 : i32
    %c0_i32_1 = arith.constant 0 : i32
    return %c0_i32, %c0_i32_0 : i32, i32
  }
  func.func @transform_5(%arg0: i32) -> (i32, i32) {
    %c0_i32 = arith.constant 0 : i32
    %c0_i32_0 = arith.constant 0 : i32
    return %arg0, %c0_i32 : i32, i32
  }
}

</mosaic_0001>

<llo_original>
// kernel: tpu_custom_call.1
$region0: #{tpu_custom_call.1}
  #allocation0 [shape = 'u32[]', space=smem, size = 0x4, offset = 0x4, fixed_abs, tag = 'smem constant byte address 0x4 - core index']
  #allocation1 [shape = 'u32[144,128]{1,0:T(1,128)}', space=vmem, size = 0x12000, scoped, tag = 'internal scratch']
  %s0 = inlined_call_operand.vmem [shape: f32[8,4], index: 0, kind: input, shape index: {}]
  %s1 = inlined_call_operand.vmem [shape: f32[4,10], index: 1, kind: input, shape index: {}]
  %s2 = inlined_call_operand.vmem [shape: f32[1,10], index: 2, kind: input, shape index: {}]
  %s3 = inlined_call_operand.vmem [shape: f32[10,2], index: 3, kind: input, shape index: {}]
  %s4 = inlined_call_operand.vmem [shape: f32[1,2], index: 4, kind: input, shape index: {}]
  %s5 = inlined_call_operand.vmem [shape: f32[8,2], index: 5, kind: output, shape index: {}]
  %s6 = sld [smem:[#allocation0]]
  $region30: #{tpu_custom_call.1} parent=0
    _
  %s8 = ssub.s32 1, %s6
  %s9 = scalar_select 0, %s8, %s6
  // Predicated region
  $region2: #{tpu_custom_call.1} parent=0 // pred_check
    _
  $region3: #{tpu_custom_call.1} parent=0 // pred_check_branch
    %11 = sbr.rel (0) target = $region5
  $region4: #{tpu_custom_call.1} parent=0 // pred_region
    _
  $region5: #{tpu_custom_call.1} parent=0 // pred_fallthru
    _
  // Predicated region
  $region6: #{tpu_custom_call.1} parent=0 // pred_check
    _
  $region7: #{tpu_custom_call.1} parent=0 // pred_check_branch
    %13 = sbr.rel (0) target = $region9
  $region8: #{tpu_custom_call.1} parent=0 // pred_region
    _
  $region9: #{tpu_custom_call.1} parent=0 // pred_fallthru
    _
  // Predicated region
  $region10: #{tpu_custom_call.1} parent=0 // pred_check
    _
  $region11: #{tpu_custom_call.1} parent=0 // pred_check_branch
    %15 = sbr.rel (0) target = $region13
  $region12: #{tpu_custom_call.1} parent=0 // pred_region
    _
  $region13: #{tpu_custom_call.1} parent=0 // pred_fallthru
    _
  // Predicated region
  $region14: #{tpu_custom_call.1} parent=0 // pred_check
    _
  $region15: #{tpu_custom_call.1} parent=0 // pred_check_branch
    %17 = sbr.rel (0) target = $region17
  $region16: #{tpu_custom_call.1} parent=0 // pred_region
    _
  $region17: #{tpu_custom_call.1} parent=0 // pred_fallthru
    _
  // Predicated region
  $region18: #{tpu_custom_call.1} parent=0 // pred_check
    _
  $region19: #{tpu_custom_call.1} parent=0 // pred_check_branch
    %19 = sbr.rel (0) target = $region21
  $region20: #{tpu_custom_call.1} parent=0 // pred_region
    _
  $region21: #{tpu_custom_call.1} parent=0 // pred_fallthru
    _
  %v20 = vld [vmem:[%s0] sm:$0xff]
  %v21 = vld [vmem:[%s1] sm:$0xf]
  %v22 = vld [vmem:[%s2] sm:$0x1]
  %v24 = vlaneseq
  %v25 = vshrl.u32 %v24, 7
  %v26 = vsub.s32 0, %v25
  %v27 = vrot.slane %v22, %v26
  %vm29 = vcmask 31744
  %v31 = vsel %vm29, %v20, 0
  %vm33 = vcmask 1043456
  %v35 = vsel %vm33, %v21, 0
  %37 = vmatprep.subr.mxu0 0.0
  %38 = vmatpush1.msra.mxu0 0.0
  %39 = vmatprep.subr.mxu0 0.0
  %40 = vmatpush1.msra.mxu0 0.0
  %41 = vmatprep.subr.mxu0 0.0
  %42 = vmatpush1.msra.mxu0 0.0
  %43 = vmatprep.subr.mxu0 0.0
  %44 = vmatpush1.msra.mxu0 0.0
  %45 = vmatprep.subr.mxu0 0.0
  %46 = vmatpush1.msra.mxu0 0.0
  %47 = vmatprep.subr.mxu0 0.0
  %48 = vmatpush1.msra.mxu0 0.0
  %49 = vmatprep.subr.mxu0 0.0
  %50 = vmatpush1.msra.mxu0 0.0
  %51 = vmatprep.subr.mxu0 0.0
  %52 = vmatpush1.msra.mxu0 0.0
  %53 = vmatprep.subr.mxu0 0.0
  %54 = vmatpush1.msra.mxu0 0.0
  %55 = vmatprep.subr.mxu0 0.0
  %56 = vmatpush1.msra.mxu0 0.0
  %57 = vmatprep.subr.mxu0 0.0
  %58 = vmatpush1.msra.mxu0 0.0
  %59 = vmatprep.subr.mxu0 0.0
  %60 = vmatpush1.msra.mxu0 0.0
  %61 = vmatprep.subr.mxu0 0.0
  %62 = vmatpush1.msra.mxu0 0.0
  %63 = vmatprep.subr.mxu0 0.0
  %64 = vmatpush1.msra.mxu0 0.0
  %65 = vmatprep.subr.mxu0 0.0
  %66 = vmatpush1.msra.mxu0 0.0
  %67 = vmatprep.subr.mxu0 0.0
  %68 = vmatpush1.msra.mxu0 %v35
  %69 = vmatprep.subr.mxu0 0.0
  %70 = vmatpush2.msra.mxu0 0.0
  %71 = vmatprep.subr.mxu0 0.0
  %72 = vmatpush2.msra.mxu0 0.0
  %73 = vmatprep.subr.mxu0 0.0
  %74 = vmatpush2.msra.mxu0 0.0
  %75 = vmatprep.subr.mxu0 0.0
  %76 = vmatpush2.msra.mxu0 0.0
  %77 = vmatprep.subr.mxu0 0.0
  %78 = vmatpush2.msra.mxu0 0.0
  %79 = vmatprep.subr.mxu0 0.0
  %80 = vmatpush2.msra.mxu0 0.0
  %81 = vmatprep.subr.mxu0 0.0
  %82 = vmatpush2.msra.mxu0 0.0
  %83 = vmatprep.subr.mxu0 0.0
  %84 = vmatpush2.msra.mxu0 0.0
  %85 = vmatprep.subr.mxu0 0.0
  %86 = vmatpush2.msra.mxu0 0.0
  %87 = vmatprep.subr.mxu0 0.0
  %88 = vmatpush2.msra.mxu0 0.0
  %89 = vmatprep.subr.mxu0 0.0
  %90 = vmatpush2.msra.mxu0 0.0
  %91 = vmatprep.subr.mxu0 0.0
  %92 = vmatpush2.msra.mxu0 0.0
  %93 = vmatprep.subr.mxu0 0.0
  %94 = vmatpush2.msra.mxu0 0.0
  %95 = vmatprep.subr.mxu0 0.0
  %96 = vmatpush2.msra.mxu0 0.0
  %97 = vmatprep.subr.mxu0 0.0
  %98 = vmatpush2.msra.mxu0 0.0
  %99 = vmatprep.subr.mxu0 0.0
  %100 = vmatpush2.msra.mxu0 0.0
  %101 = vmatprep.mubr.f32.mxu0 0.0
  %102 = vmatmul.mubr.f32.gmra.mxu0 %v31
  %v103 = vpop.f32.mrf.mxu0
  %v104 = vadd.f32 %v27, %v103
  %v105 = vpop.f32.mrf.mxu0
  %106 = vdwg.mxu0
  %v107 = vmax.f32 %v104, 0.0
  %v108 = vld [vmem:[%s3] sm:$0xff]
  %v109 = vld [vmem:[%s3 + $0x8] sm:$0x3]
  %v110 = vld [vmem:[%s4] sm:$0x1]
  %v112 = vlaneseq
  %v113 = vshrl.u32 %v112, 7
  %v114 = vsub.s32 0, %v113
  %v115 = vrot.slane %v110, %v114
  %vm117 = vcmask 80896
  %v119 = vsel %vm117, %v107, 0
  %vm121 = vcmask 1041408
  %v123 = vsel %vm121, %v109, 0
  %125 = vmatprep.subr.mxu0 0.0
  %126 = vmatpush1.msra.mxu0 0.0
  %127 = vmatprep.subr.mxu0 0.0
  %128 = vmatpush1.msra.mxu0 0.0
  %129 = vmatprep.subr.mxu0 0.0
  %130 = vmatpush1.msra.mxu0 0.0
  %131 = vmatprep.subr.mxu0 0.0
  %132 = vmatpush1.msra.mxu0 0.0
  %133 = vmatprep.subr.mxu0 0.0
  %134 = vmatpush1.msra.mxu0 0.0
  %135 = vmatprep.subr.mxu0 0.0
  %136 = vmatpush1.msra.mxu0 0.0
  %137 = vmatprep.subr.mxu0 0.0
  %138 = vmatpush1.msra.mxu0 0.0
  %139 = vmatprep.subr.mxu0 0.0
  %140 = vmatpush1.msra.mxu0 0.0
  %141 = vmatprep.subr.mxu0 0.0
  %142 = vmatpush1.msra.mxu0 0.0
  %143 = vmatprep.subr.mxu0 0.0
  %144 = vmatpush1.msra.mxu0 0.0
  %145 = vmatprep.subr.mxu0 0.0
  %146 = vmatpush1.msra.mxu0 0.0
  %147 = vmatprep.subr.mxu0 0.0
  %148 = vmatpush1.msra.mxu0 0.0
  %149 = vmatprep.subr.mxu0 0.0
  %150 = vmatpush1.msra.mxu0 0.0
  %151 = vmatprep.subr.mxu0 0.0
  %152 = vmatpush1.msra.mxu0 0.0
  %153 = vmatprep.subr.mxu0 0.0
  %154 = vmatpush1.msra.mxu0 %v123
  %155 = vmatprep.subr.mxu0 0.0
  %156 = vmatpush1.msra.mxu0 %v108
  %157 = vmatprep.subr.mxu0 0.0
  %158 = vmatpush2.msra.mxu0 0.0
  %159 = vmatprep.subr.mxu0 0.0
  %160 = vmatpush2.msra.mxu0 0.0
  %161 = vmatprep.subr.mxu0 0.0
  %162 = vmatpush2.msra.mxu0 0.0
  %163 = vmatprep.subr.mxu0 0.0
  %164 = vmatpush2.msra.mxu0 0.0
  %165 = vmatprep.subr.mxu0 0.0
  %166 = vmatpush2.msra.mxu0 0.0
  %167 = vmatprep.subr.mxu0 0.0
  %168 = vmatpush2.msra.mxu0 0.0
  %169 = vmatprep.subr.mxu0 0.0
  %170 = vmatpush2.msra.mxu0 0.0
  %171 = vmatprep.subr.mxu0 0.0
  %172 = vmatpush2.msra.mxu0 0.0
  %173 = vmatprep.subr.mxu0 0.0
  %174 = vmatpush2.msra.mxu0 0.0
  %175 = vmatprep.subr.mxu0 0.0
  %176 = vmatpush2.msra.mxu0 0.0
  %177 = vmatprep.subr.mxu0 0.0
  %178 = vmatpush2.msra.mxu0 0.0
  %179 = vmatprep.subr.mxu0 0.0
  %180 = vmatpush2.msra.mxu0 0.0
  %181 = vmatprep.subr.mxu0 0.0
  %182 = vmatpush2.msra.mxu0 0.0
  %183 = vmatprep.subr.mxu0 0.0
  %184 = vmatpush2.msra.mxu0 0.0
  %185 = vmatprep.subr.mxu0 0.0
  %186 = vmatpush2.msra.mxu0 0.0
  %187 = vmatprep.subr.mxu0 0.0
  %188 = vmatpush2.msra.mxu0 0.0
  %189 = vmatprep.mubr.f32.mxu0 0.0
  %190 = vmatmul.mubr.f32.gmra.mxu0 %v119
  %v191 = vpop.f32.mrf.mxu0
  %v192 = vadd.f32 %v115, %v191
  %v193 = vpop.f32.mrf.mxu0
  %194 = vdwg.mxu0
  %vm195 = vcmask 15360
  %196 = vst.msk [vmem:[%s5] sm:$0xff] %vm195, %v192
  // Predicated region
  $region22: #{tpu_custom_call.1} parent=0 // pred_check
    _
  $region23: #{tpu_custom_call.1} parent=0 // pred_check_branch
    %198 = sbr.rel (0) target = $region25
  $region24: #{tpu_custom_call.1} parent=0 // pred_region
    _
  $region25: #{tpu_custom_call.1} parent=0 // pred_fallthru
    _
  // Predicated region
  $region26: #{tpu_custom_call.1} parent=0 // pred_check
    _
  $region27: #{tpu_custom_call.1} parent=0 // pred_check_branch
    %200 = sbr.rel (0) target = $region29
  $region28: #{tpu_custom_call.1} parent=0 // pred_region
    _
  $region29: #{tpu_custom_call.1} parent=0 // pred_fallthru
    _

</llo_original>
